<compile_context>
chip_gen: v5e
topology: v5e:2x2
jax: 0.10.0
libtpu: 0.0.40
codegen_flags: <defaults>
</compile_context>

<pallas_src>
import random as pyrandom

import jax
import jax.numpy as jnp
from jax.experimental import pallas as pl
from jax.experimental.pallas import tpu as pltpu


# ---------------------------------------------------------------------------
# Kernel: fill an HWC-flattened (tile_h, 3*W) block with color[lane % 3].
# ---------------------------------------------------------------------------
def _bg_aug_hwc_kernel(color_ref, o_ref, pattern_ref):
    # color_ref:   SMEM (3,) float32 — color already quantized to the output dtype.
    # o_ref:       VMEM (tile_h, 3*W) output block (HWC flattened along lanes).
    # pattern_ref: VMEM (tile_h, 3*W) persistent scratch in the output dtype.
    @pl.when(pl.program_id(0) == 0)
    def _init():
        tile_h, row_len = pattern_ref.shape
        lane = jax.lax.broadcasted_iota(jnp.int32, (tile_h, row_len), 1)
        m = lane % 3
        c0 = color_ref[0]
        c1 = color_ref[1]
        c2 = color_ref[2]
        pat = jnp.where(m == 0, c0, jnp.where(m == 1, c1, c2))
        pattern_ref[...] = pat.astype(pattern_ref.dtype)

    # Steady state: pure copy (1 vld + 1 vst per vreg) -> store-DMA bound.
    o_ref[...] = pattern_ref[...]


# ---------------------------------------------------------------------------
# Generation-aware tiling / VMEM budget
# ---------------------------------------------------------------------------
def _vmem_budget():
    """Return (per-tile target bytes, vmem_limit_bytes) for the local TPU gen.

    Budget accounts for 2 double-buffered output tiles + 1 scratch tile = 3x tile.
    """
    kind = ""
    try:
        kind = jax.devices()[0].device_kind.lower()
    except Exception:
        pass
    if "v7" in kind or "7x" in kind:
        # 64 MiB physical VMEM: ~12 MiB tiles, 3x = 36 MiB + slack.
        return 12 << 20, 44 << 20
    if "v6" in kind:
        # 128 MiB physical VMEM: big tiles amortize per-step overhead.
        return 16 << 20, 56 << 20
    if "v5" in kind or "v4" in kind:
        # Slow HBM: per-step overhead already small; modest tiles suffice.
        return 8 << 20, 32 << 20
    # Unknown chip: conservative defaults.
    return 6 << 20, 24 << 20


def _choose_tile_h(h, row_len, itemsize, target_bytes):
    """Pick a row-tile height: sublane-aligned, ~target_bytes per output buffer."""
    sub = {4: 8, 2: 16, 1: 32}.get(itemsize, 8)
    if h <= sub:
        return h  # block == full array height -> always a legal block shape
    rows_fit = max(1, target_bytes // max(1, row_len * itemsize))
    if rows_fit >= h:
        return h  # whole output fits comfortably in one block
    tile_h = max(sub, (rows_fit // sub) * sub)  # keep sublane packing aligned
    return min(tile_h, h)


def broadcast_color_pallas(color, h, w, dtype, tile_h=None):
    """repeat(color.to(dtype), 'c -> h w c', h=h, w=w) via a Pallas TPU kernel.

    Writes a lane-dense (H, 3*W) slab and reshapes to (H, W, 3) (free bitcast).
    """
    dtype = jnp.dtype(dtype)
    row_len = 3 * w
    # torch semantics: cast the color to dirs.dtype BEFORE broadcasting.
    color_q = color.astype(dtype)
    # SMEM carries 32-bit scalars; re-casting to dtype in-kernel is exact.
    color_smem = color_q.astype(jnp.float32)

    tile_target, vmem_limit = _vmem_budget()
    if tile_h is None:
        tile_h = _choose_tile_h(h, row_len, dtype.itemsize, tile_target)
    tile_h = min(tile_h, h)
    grid = (pl.cdiv(h, tile_h),)

    flat = pl.pallas_call(
        _bg_aug_hwc_kernel,
        out_shape=jax.ShapeDtypeStruct((h, row_len), dtype),
        grid=grid,
        in_specs=[pl.BlockSpec(memory_space=pltpu.MemorySpace.SMEM)],
        out_specs=pl.BlockSpec((tile_h, row_len), lambda i: (i, 0)),
        scratch_shapes=[pltpu.VMEM((tile_h, row_len), dtype)],
        compiler_params=pltpu.CompilerParams(
            # "arbitrary": scratch is initialized only on program_id(0)==0, so the
            # row axis must run sequentially on a single core.
            dimension_semantics=("arbitrary",),
            vmem_limit_bytes=vmem_limit,
        ),
    )(color_smem)
    return flat.reshape(h, w, 3)


# ---------------------------------------------------------------------------
# Module port
# ---------------------------------------------------------------------------
class Config:
    def __init__(self, random_aug=True, random_aug_prob=0.5, device="tpu"):
        self.random_aug = random_aug
        self.random_aug_prob = random_aug_prob
        self.device = device


class Background:
    """JAX/Pallas port of the PyTorch `Background` base module."""

    # Below this many output bytes, XLA's fused broadcast beats Pallas launch cost.
    _PALLAS_MIN_BYTES = 256 * 1024

    def __init__(self, cfg):
        self.cfg = cfg
        self.device = cfg.device
        self.random_aug = cfg.random_aug
        self.random_aug_prob = cfg.random_aug_prob
        self.training = True  # mirrors nn.Module training flag

    def get_bg(self, dirs):
        # TODO(synk): get_bg is abstract in the reference module (NotImplementedError);
        # concrete subclasses define the non-augmented background.
        raise NotImplementedError

    def forward(self, dirs, rng):
        if not self.random_aug or not self.training:
            return self.get_bg(dirs)
        elif pyrandom.random() < self.random_aug_prob:
            return self.get_bg(dirs)
        else:
            # torch.rand(3).to(dirs): uniform [0,1) color, cast to dirs dtype,
            # then repeat 'c -> h w c'.
            # TODO(synk): pyrandom.random() runs at Python trace time; under jit the
            # coin flip is baked into the compiled graph (diverges from per-call torch).
            color = jax.random.uniform(rng, (3,), dtype=jnp.float32)
            h, w = dirs.shape[0], dirs.shape[1]
            dtype = jnp.dtype(dirs.dtype)
            nbytes = h * w * 3 * dtype.itemsize
            if nbytes < self._PALLAS_MIN_BYTES:
                # Small output: skip the kernel (launch overhead dominates).
                return jnp.broadcast_to(
                    color.astype(dtype)[None, None, :], (h, w, 3)
                )
            return broadcast_color_pallas(color, h, w, dtype)


# ---------------------------------------------------------------------------
# Self-test
# ---------------------------------------------------------------------------
if __name__ == "__main__":
    pyrandom.seed(0)
    key = jax.random.PRNGKey(0)
    k_dirs, k_color = jax.random.split(key)

    color = jax.random.uniform(k_color, (3,), dtype=jnp.float32)

    # --- 1) Direct Pallas kernel, multi-block row grid (tile_h=16 -> grid=(4,)) ---
    # Exercises both the pid==0 scratch-init path and the steady-state copy path.
    H, W = 64, 128  # row_len = 384 lanes (multiple of 128)
    out_f32 = broadcast_color_pallas(color, H, W, jnp.float32, tile_h=16)
    out_f32 = jax.block_until_ready(out_f32)
    exp_f32 = jnp.broadcast_to(color[None, None, :], (H, W, 3))
    assert out_f32.shape == (H, W, 3), out_f32.shape
    assert out_f32.dtype == jnp.float32
    assert jnp.allclose(out_f32, exp_f32, atol=1e-6), "f32 kernel mismatch"

    # --- 2) Direct Pallas kernel, bf16 output (16-row sublane-aligned tiles) ---
    out_bf16 = broadcast_color_pallas(color, H, W, jnp.bfloat16, tile_h=32)
    out_bf16 = jax.block_until_ready(out_bf16)
    exp_bf16 = jnp.broadcast_to(
        color.astype(jnp.bfloat16)[None, None, :], (H, W, 3)
    )
    assert out_bf16.dtype == jnp.bfloat16
    assert jnp.array_equal(out_bf16, exp_bf16), "bf16 kernel mismatch"

    # --- 3) Module forward, small image -> broadcast_to fast path ---
    Hs, Ws = 16, 16
    dirs_small = jax.random.normal(k_dirs, (Hs, Ws, 3), dtype=jnp.float32)
    cfg = Config(random_aug=True, random_aug_prob=0.0)  # force random-color branch
    bg = Background(cfg)
    bg.training = True
    out_small = jax.block_until_ready(bg.forward(dirs_small, k_color))
    exp_small = jnp.broadcast_to(color[None, None, :], (Hs, Ws, 3))
    assert out_small.shape == (Hs, Ws, 3)
    assert out_small.dtype == dirs_small.dtype
    assert jnp.allclose(out_small, exp_small, atol=1e-6), "small-path mismatch"

    # --- 4) Module forward, large enough to take the Pallas path ---
    Hl, Wl = 128, 192  # 128*192*3*4 B = 288 KB >= 256 KB threshold
    dirs_large = jax.random.normal(k_dirs, (Hl, Wl, 3), dtype=jnp.float32)
    out_large = jax.block_until_ready(bg.forward(dirs_large, k_color))
    exp_large = jnp.broadcast_to(color[None, None, :], (Hl, Wl, 3))
    assert out_large.shape == (Hl, Wl, 3)
    assert jnp.allclose(out_large, exp_large, atol=1e-6), "large-path mismatch"

    print("KERNEL_OK")
</pallas_src>

<mosaic_0001>
module attributes {stable_mosaic.version = 11 : i64} {
  func.func @_bg_aug_hwc_kernel(%arg0: i32, %arg1: memref<3xf32, #tpu.memory_space<smem>>, %arg2: memref<16x384xf32, #tpu.memory_space<vmem>>, %arg3: memref<16x384xf32, #tpu.memory_space<vmem>>) attributes {dimension_semantics = [#tpu.dimension_semantics<arbitrary>], iteration_bounds = array<i64: 4>, scalar_prefetch = 0 : i64, scratch_operands = 1 : i64, tpu.core_type = #tpu.core_type<tc>, window_params = [{transform_indices = @transform_0, window_bounds = array<i64: 3>}, {transform_indices = @transform_1, window_bounds = array<i64: 16, 384>}]} {
    %c0_i32 = arith.constant 0 : i32
    %0 = arith.cmpi eq, %arg0, %c0_i32 : i32
    %1 = arith.extui %0 : i1 to i32
    %c0_i32_0 = arith.constant 0 : i32
    %2 = arith.cmpi ne, %1, %c0_i32_0 : i32
    scf.if %2 {
      %5 = tpu.iota {dimensions = array<i32: 1>} : vector<16x384xi32>
      %c3_i32 = arith.constant 3 : i32
      %c0_i32_4 = arith.constant 0 : i32
      %6 = arith.cmpi eq, %c3_i32, %c0_i32_4 : i32
      %c1_i32 = arith.constant 1 : i32
      %7 = arith.select %6, %c1_i32, %c3_i32 : i32
      %8 = vector.broadcast %7 : i32 to vector<16x384xi32>
      %9 = arith.remsi %5, %8 : vector<16x384xi32>
      %c0_i32_5 = arith.constant 0 : i32
      %10 = vector.broadcast %c0_i32_5 : i32 to vector<16x384xi32>
      %11 = arith.cmpi ne, %9, %10 : vector<16x384xi32>
      %c0_i32_6 = arith.constant 0 : i32
      %12 = vector.broadcast %c0_i32_6 : i32 to vector<16x384xi32>
      %13 = arith.cmpi slt, %9, %12 : vector<16x384xi32>
      %c0_i32_7 = arith.constant 0 : i32
      %14 = arith.cmpi slt, %7, %c0_i32_7 : i32
      %15 = vector.broadcast %14 : i1 to vector<16x384xi1>
      %16 = vector.broadcast %15 : vector<16x384xi1> to vector<16x384xi1>
      %17 = arith.xori %13, %16 : vector<16x384xi1>
      %18 = arith.andi %17, %11 : vector<16x384xi1>
      %19 = vector.broadcast %7 : i32 to vector<16x384xi32>
      %20 = arith.addi %9, %19 : vector<16x384xi32>
      %21 = arith.select %18, %20, %9 : vector<16x384xi1>, vector<16x384xi32>
      %c0_8 = arith.constant 0 : index
      %22 = memref.load %arg1[%c0_8] : memref<3xf32, #tpu.memory_space<smem>>
      %c1 = arith.constant 1 : index
      %23 = memref.load %arg1[%c1] : memref<3xf32, #tpu.memory_space<smem>>
      %c2 = arith.constant 2 : index
      %24 = memref.load %arg1[%c2] : memref<3xf32, #tpu.memory_space<smem>>
      %c0_i32_9 = arith.constant 0 : i32
      %25 = vector.broadcast %c0_i32_9 : i32 to vector<16x384xi32>
      %26 = arith.cmpi eq, %21, %25 : vector<16x384xi32>
      %c1_i32_10 = arith.constant 1 : i32
      %27 = vector.broadcast %c1_i32_10 : i32 to vector<16x384xi32>
      %28 = arith.cmpi eq, %21, %27 : vector<16x384xi32>
      %29 = vector.broadcast %23 : f32 to vector<16x384xf32>
      %30 = vector.broadcast %24 : f32 to vector<16x384xf32>
      %31 = arith.select %28, %29, %30 : vector<16x384xi1>, vector<16x384xf32>
      %32 = vector.broadcast %22 : f32 to vector<16x384xf32>
      %33 = arith.select %26, %32, %31 : vector<16x384xi1>, vector<16x384xf32>
      %c0_11 = arith.constant 0 : index
      %c0_12 = arith.constant 0 : index
      %34 = vector.load %arg3[%c0_11, %c0_12] : memref<16x384xf32, #tpu.memory_space<vmem>>, vector<16x384xf32>
      tpu.vector_store %arg3[%c0_11, %c0_12], %33 {strides = array<i32>} : memref<16x384xf32, #tpu.memory_space<vmem>>, vector<16x384xf32>,
    } else {
    }
    %c0 = arith.constant 0 : index
    %c0_1 = arith.constant 0 : index
    %3 = vector.load %arg3[%c0, %c0_1] : memref<16x384xf32, #tpu.memory_space<vmem>>, vector<16x384xf32>
    %c0_2 = arith.constant 0 : index
    %c0_3 = arith.constant 0 : index
    %4 = vector.load %arg2[%c0_2, %c0_3] : memref<16x384xf32, #tpu.memory_space<vmem>>, vector<16x384xf32>
    tpu.vector_store %arg2[%c0_2, %c0_3], %3 {strides = array<i32>} : memref<16x384xf32, #tpu.memory_space<vmem>>, vector<16x384xf32>,
    return
  }
  func.func @transform_0(%arg0: i32) -> i32 {
    %c0_i32 = arith.constant 0 : i32
    %c0_i32_0 = arith.constant 0 : i32
    return %c0_i32 : i32
  }
  func.func @transform_1(%arg0: i32) -> (i32, i32) {
    %c0_i32 = arith.constant 0 : i32
    %c0_i32_0 = arith.constant 0 : i32
    return %arg0, %c0_i32 : i32, i32
  }
}

</mosaic_0001>

<llo_original>
// kernel: tpu_custom_call.1
$region0: #{tpu_custom_call.1}
  #allocation0 [shape = 'u32[]', space=smem, size = 0x4, offset = 0x4, fixed_abs, tag = 'smem constant byte address 0x4 - core index']
  #allocation1 [shape = 'u32[72,128]{1,0:T(1,128)}', space=vmem, size = 0x9000, scoped, tag = 'internal scratch']
  #allocation2 [shape = 'f32[16,384]{1,0:T(8,128)}', space=vmem, size = 0x6000, scoped, tag = 'scratch operand']
  %s0 = inlined_call_operand.hbm [shape: f32[3], index: 0, kind: input, shape index: {}]
  %s1 = inlined_call_operand.hbm [shape: f32[64,384], index: 1, kind: output, shape index: {}]
  %s2 = sld [smem:[#allocation0]]
  $region45: #{tpu_custom_call.1} parent=0
    _
  %s4 = ssub.s32 1, %s2
  %s5 = scalar_select 0, %s4, %s2
  $region1: #{tpu_custom_call.1} parent=0
    #allocation3 [shape = 'u8[512]{0}', space=smem, size = 0x200, scoped, tag = 'input window, operand 0, single buffered']
    #allocation4 [shape = 's32[2]{0}', space=sflag, size = 0x8, scoped, tag = 'scoped memory for tpu_custom_call.1']
    #allocation5 [shape = 's32[2]{0}', space=sflag, size = 0x8, scoped, tag = 'scoped memory for tpu_custom_call.1']
    #allocation6 [shape = 'u8[49152]{0}', space=vmem, size = 0xc000, scoped, tag = 'output window, operand 0']
    %6 = vsyncpa [#allocation5], 0
    %7 = vsyncpa [#allocation4], 0
    %s8 = scalar_lea.sflag [#allocation4], 1
    %9 = vsyncpa %s8, 0
    loop: start=0, step=1, limit=6
    $region2: #{tpu_custom_call.1} parent=1 // loop_pre_header
      _
    $region3: #{tpu_custom_call.1} parent=1 // loop_header
      %s11 = sphi 0, %s15
      %p12 = scmp.ge.s32.totalorder %s11, 6
      %s19 = sphi 0, %s19
      %s21 = sphi 0, %s19
      %s22 = sphi 0, %s21
      %s36 = sphi 0, %s22
      %s42 = sphi 0, %s44
      %s45 = sphi 0, %s42
      %s46 = sphi 0, %s45
      %s62 = sphi 0, %s46
    $region4: #{tpu_custom_call.1} parent=1 // loop_header_branch
      %14 = sbr.rel (%p12) target = $region8
    $region5: #{tpu_custom_call.1} parent=1 // loop_body
      %s16 = ssub.s32 %s11, 1
      %s17 = ssub.s32 %s11, 2
      %s18 = sadd.s32 %s11, 1
      %s20 = sadd.s32 %s19, 1
      %p23 = scmp.eq.s32.totalorder %s11, 3
      %p24 = scmp.ne.s32.totalorder %s19, %s21
      %p25 = scmp.eq.s32.totalorder %s11, 0
      %p26 = por %p24, %p25
      %p27 = scmp.ne.s32.totalorder %s19, %s21
      %p28 = scmp.eq.s32.totalorder %s16, 3
      %p29 = por %p27, %p28
      %p30 = scmp.ne.s32.totalorder %s21, %s22
      %p31 = scmp.eq.s32.totalorder %s16, 0
      %p32 = por %p30, %p31
      %p33 = scmp.ne.s32.totalorder %s21, %s22
      %p34 = scmp.eq.s32.totalorder %s17, 3
      %p35 = por %p33, %p34
      %p37 = scmp.ne.s32.totalorder %s22, %s36
      %p38 = scmp.eq.s32.totalorder %s17, 0
      %p39 = por %p37, %p38
      %s40 = ssub.s32 %s11, %s18
      %p41 = scmp.eq.s32.totalorder %s40, 0
      %s43 = sadd.s32 %s42, 1
      %s44 = scalar_select %p41, %s42, %s43
      %p47 = pneg %p41
      %p48 = scmp.eq.s32.totalorder %s11, 3
      %p49 = por %p47, %p48
      %p50 = scmp.ne.s32.totalorder %s42, %s45
      %p51 = scmp.eq.s32.totalorder %s11, 0
      %p52 = por %p50, %p51
      %p53 = scmp.ne.s32.totalorder %s42, %s45
      %p54 = scmp.eq.s32.totalorder %s16, 3
      %p55 = por %p53, %p54
      %p56 = scmp.ne.s32.totalorder %s45, %s46
      %p57 = scmp.eq.s32.totalorder %s16, 0
      %p58 = por %p56, %p57
      %p59 = scmp.ne.s32.totalorder %s45, %s46
      %p60 = scmp.eq.s32.totalorder %s17, 3
      %p61 = por %p59, %p60
      %p63 = scmp.ne.s32.totalorder %s46, %s62
      %p64 = scmp.eq.s32.totalorder %s17, 0
      %p65 = por %p63, %p64
      %p66 = scmp.le.s32.totalorder 1, %s11
      %p67 = scmp.lt.s32.totalorder %s11, 5
      %p68 = pnand %p66, %p67
      %p69 = pneg %p68
      // Predicated region
      $region9: #{tpu_custom_call.1} parent=5 // pred_check
        _
      $region10: #{tpu_custom_call.1} parent=5 // pred_check_branch
        %71 = sbr.rel (%p68) target = $region12
      $region11: #{tpu_custom_call.1} parent=5 // pred_region
        %s72 = ssub.s32 %s11, 1
        // Predicated region
        $region13: #{tpu_custom_call.1} parent=11 // pred_check
          %p73 = pneg %p32
        $region14: #{tpu_custom_call.1} parent=11 // pred_check_branch
          %75 = sbr.rel (%p73) target = $region16
        $region15: #{tpu_custom_call.1} parent=11 // pred_region
          %77 = vsyncadd [#allocation5], 0
          %s79 = sshll.u32 %s0, 4
          %s80 = int_to_ptr.hbm [resolvable:$true] %s79
          %82 = dma.hbm_to_smem %s80, 16, [#allocation3], [#allocation5]
        $region16: #{tpu_custom_call.1} parent=11 // pred_fallthru
          _
      $region12: #{tpu_custom_call.1} parent=5 // pred_fallthru
        _
      %p83 = scmp.lt.s32.totalorder %s11, 4
      // Predicated region
      $region17: #{tpu_custom_call.1} parent=5 // pred_check
        %p84 = pneg %p83
      $region18: #{tpu_custom_call.1} parent=5 // pred_check_branch
        %86 = sbr.rel (%p84) target = $region20
      $region19: #{tpu_custom_call.1} parent=5 // pred_region
        _
      $region20: #{tpu_custom_call.1} parent=5 // pred_fallthru
        _
      %p87 = scmp.le.s32.totalorder 1, %s11
      %p88 = scmp.lt.s32.totalorder %s11, 5
      %p89 = pnand %p87, %p88
      %p90 = pneg %p89
      // Predicated region
      $region21: #{tpu_custom_call.1} parent=5 // pred_check
        _
      $region22: #{tpu_custom_call.1} parent=5 // pred_check_branch
        %92 = sbr.rel (%p89) target = $region24
      $region23: #{tpu_custom_call.1} parent=5 // pred_region
        %s93 = ssub.s32 %s11, 1
        // Predicated region
        $region25: #{tpu_custom_call.1} parent=23 // pred_check
          %p94 = pneg %p32
        $region26: #{tpu_custom_call.1} parent=23 // pred_check_branch
          %96 = sbr.rel (%p94) target = $region28
        $region27: #{tpu_custom_call.1} parent=23 // pred_region
          %98 = dma.done [#allocation5], 16
        $region28: #{tpu_custom_call.1} parent=23 // pred_fallthru
          _
        %99 = sfence
        %p100 = pneg %p32
        %p101 = pneg %p29
        %p102 = pneg %p58
        %p103 = pneg %p55
        %s104 = sand.u32 %s45, 1
        %s105 = scalar_lea.sflag [#allocation4], %s104
        %s106 = sand.u32 %s45, 1
        %s107 = smul.addr %s106, 48
        %s108 = scalar_lea.vmem [#allocation6], %s107
        %s109 = smul.u32 2, %s16
        %p110 = scmp.eq.s32.totalorder %s16, 0
        // Predicated region
        $region29: #{tpu_custom_call.1} parent=23 // pred_check
          %p111 = pneg %p110
        $region30: #{tpu_custom_call.1} parent=23 // pred_check_branch
          %113 = sbr.rel (%p111) target = $region32
        $region31: #{tpu_custom_call.1} parent=23 // pred_region
          %v114 = vlaneseq
          %v115 = vand.u32 %v114, 127
          %v116 = vadd.s32 %v115, 128
          %v117 = vadd.s32 %v115, 256
          %vm118 = vcmp.lt.s32.totalorder %v115, 0
          %v119 = vsub.s32 0, %v115
          %v120 = vsel %vm118, %v119, %v115
          %v121 = vand.u32 %v120, 65535
          %v122 = vshrl.u32 %v120, 16
          %v124 = vmul.u32 %v121, 43691
          %v125 = vmul.u32 %v121, 43690
          %v126 = vmul.u32 %v122, 43691
          %v127 = vmul.u32 %v122, 43690
          %v128 = vshll.u32 %v125, 16
          %v129 = vshrl.u32 %v125, 16
          %v130 = vshll.u32 %v126, 16
          %v131 = vshrl.u32 %v126, 16
          %vm132 = vc.u32 %v124, %v128
          %v133 = vsel %vm132, 1, 0
          %v134 = vadd.s32 %v124, %v128
          %v135 = vadd.s32 %v127, %v133
          %vm136 = vc.u32 %v134, %v130
          %v137 = vsel %vm136, 1, 0
          %v138 = vadd.s32 %v134, %v130
          %v139 = vadd.s32 %v135, %v137
          %v140 = vadd.s32 %v139, %v129
          %v141 = vadd.s32 %v140, %v131
          %v142 = vshrl.u32 %v141, 1
          %v143 = vmul.u32 %v142, 3
          %v144 = vsub.s32 %v120, %v143
          %v145 = vsub.s32 0, %v144
          %v146 = vsel %vm118, %v145, %v144
          %vm147 = vcmp.lt.s32.totalorder %v116, 0
          %v148 = vsub.s32 0, %v116
          %v149 = vsel %vm147, %v148, %v116
          %v150 = vand.u32 %v149, 65535
          %v151 = vshrl.u32 %v149, 16
          %v153 = vmul.u32 %v150, 43691
          %v154 = vmul.u32 %v150, 43690
          %v155 = vmul.u32 %v151, 43691
          %v156 = vmul.u32 %v151, 43690
          %v157 = vshll.u32 %v154, 16
          %v158 = vshrl.u32 %v154, 16
          %v159 = vshll.u32 %v155, 16
          %v160 = vshrl.u32 %v155, 16
          %vm161 = vc.u32 %v153, %v157
          %v162 = vsel %vm161, 1, 0
          %v163 = vadd.s32 %v153, %v157
          %v164 = vadd.s32 %v156, %v162
          %vm165 = vc.u32 %v163, %v159
          %v166 = vsel %vm165, 1, 0
          %v167 = vadd.s32 %v163, %v159
          %v168 = vadd.s32 %v164, %v166
          %v169 = vadd.s32 %v168, %v158
          %v170 = vadd.s32 %v169, %v160
          %v171 = vshrl.u32 %v170, 1
          %v172 = vmul.u32 %v171, 3
          %v173 = vsub.s32 %v149, %v172
          %v174 = vsub.s32 0, %v173
          %v175 = vsel %vm147, %v174, %v173
          %vm176 = vcmp.lt.s32.totalorder %v117, 0
          %v177 = vsub.s32 0, %v117
          %v178 = vsel %vm176, %v177, %v117
          %v179 = vand.u32 %v178, 65535
          %v180 = vshrl.u32 %v178, 16
          %v182 = vmul.u32 %v179, 43691
          %v183 = vmul.u32 %v179, 43690
          %v184 = vmul.u32 %v180, 43691
          %v185 = vmul.u32 %v180, 43690
          %v186 = vshll.u32 %v183, 16
          %v187 = vshrl.u32 %v183, 16
          %v188 = vshll.u32 %v184, 16
          %v189 = vshrl.u32 %v184, 16
          %vm190 = vc.u32 %v182, %v186
          %v191 = vsel %vm190, 1, 0
          %v192 = vadd.s32 %v182, %v186
          %v193 = vadd.s32 %v185, %v191
          %vm194 = vc.u32 %v192, %v188
          %v195 = vsel %vm194, 1, 0
          %v196 = vadd.s32 %v192, %v188
          %v197 = vadd.s32 %v193, %v195
          %v198 = vadd.s32 %v197, %v187
          %v199 = vadd.s32 %v198, %v189
          %v200 = vshrl.u32 %v199, 1
          %v201 = vmul.u32 %v200, 3
          %v202 = vsub.s32 %v178, %v201
          %v203 = vsub.s32 0, %v202
          %v204 = vsel %vm176, %v203, %v202
          %vm205 = vcmp.ne.s32.totalorder %v146, 0
          %vm206 = vcmp.ne.s32.totalorder %v175, 0
          %vm207 = vcmp.ne.s32.totalorder %v204, 0
          %vm208 = vcmp.lt.s32.totalorder %v146, 0
          %vm209 = vcmp.lt.s32.totalorder %v175, 0
          %vm210 = vcmp.lt.s32.totalorder %v204, 0
          %vm211 = vmand %vm208, %vm205
          %vm212 = vmand %vm209, %vm206
          %vm213 = vmand %vm210, %vm207
          %v214 = vadd.s32 %v146, 3
          %v215 = vadd.s32 %v175, 3
          %v216 = vadd.s32 %v204, 3
          %v217 = vsel %vm211, %v214, %v146
          %v218 = vsel %vm212, %v215, %v175
          %v219 = vsel %vm213, %v216, %v204
          %s220 = sld [smem:[#allocation3]]
          %s221 = sld [smem:[#allocation3 + $0x1]]
          %s222 = sld [smem:[#allocation3 + $0x2]]
          %vm223 = vcmp.eq.s32.totalorder %v217, 0
          %vm224 = vcmp.eq.s32.totalorder %v218, 0
          %vm225 = vcmp.eq.s32.totalorder %v219, 0
          %vm226 = vcmp.eq.s32.totalorder %v217, 1
          %vm227 = vcmp.eq.s32.totalorder %v218, 1
          %vm228 = vcmp.eq.s32.totalorder %v219, 1
          %v229 = vstv %s221
          %v230 = vstv %s222
          %v231 = vsel %vm226, %v229, %v230
          %v232 = vsel %vm227, %v229, %v230
          %v233 = vsel %vm228, %v229, %v230
          %v234 = vstv %s220
          %v235 = vsel %vm223, %v234, %v231
          %v236 = vsel %vm224, %v234, %v232
          %v237 = vsel %vm225, %v234, %v233
          %238 = vst [vmem:[#allocation2] sm:$0xff] %v235
          %239 = vst [vmem:[#allocation2 + $0x8] sm:$0xff] %v236
          %240 = vst [vmem:[#allocation2 + $0x10] sm:$0xff] %v237
          %241 = vst [vmem:[#allocation2 + $0x18] sm:$0xff] %v235
          %242 = vst [vmem:[#allocation2 + $0x20] sm:$0xff] %v236
          %243 = vst [vmem:[#allocation2 + $0x28] sm:$0xff] %v237
        $region32: #{tpu_custom_call.1} parent=23 // pred_fallthru
          _
        %v244 = vld [vmem:[#allocation2] sm:$0xff]
        %v245 = vld [vmem:[#allocation2 + $0x8] sm:$0xff]
        %v246 = vld [vmem:[#allocation2 + $0x10] sm:$0xff]
        %v247 = vld [vmem:[#allocation2 + $0x18] sm:$0xff]
        %v248 = vld [vmem:[#allocation2 + $0x20] sm:$0xff]
        %v249 = vld [vmem:[#allocation2 + $0x28] sm:$0xff]
        %250 = vst [vmem:[%s108] sm:$0xff] %v244
        %251 = vst [vmem:[%s108 + $0x8] sm:$0xff] %v245
        %252 = vst [vmem:[%s108 + $0x10] sm:$0xff] %v246
        %253 = vst [vmem:[%s108 + $0x18] sm:$0xff] %v247
        %254 = vst [vmem:[%s108 + $0x20] sm:$0xff] %v248
        %255 = vst [vmem:[%s108 + $0x28] sm:$0xff] %v249
        %s256 = sand.u32 %s45, 1
        %s257 = scalar_lea.sflag [#allocation4], %s256
        %s258 = sand.u32 %s45, 1
        %s259 = smul.addr %s258, 48
        %s260 = scalar_lea.vmem [#allocation6], %s259
        // Predicated region
        $region33: #{tpu_custom_call.1} parent=23 // pred_check
          %p261 = pneg %p55
        $region34: #{tpu_custom_call.1} parent=23 // pred_check_branch
          %263 = sbr.rel (%p261) target = $region36
        $region35: #{tpu_custom_call.1} parent=23 // pred_region
          %s264 = smul.u32 2, %s16
          %266 = vsyncadd %s257, 0
          %s267 = smul.addr %s264, 3
          %s268 = smul.addr %s267, 8
          %s269 = scalar_lea.hbm %s1, %s268
          %s270 = sshll.u32 %s260, 4
          %s271 = int_to_ptr.vmem [resolvable:$true] %s270
          %s272 = sshll.u32 %s269, 4
          %s273 = int_to_ptr.hbm [resolvable:$true] %s272
          %278 = dma.vmem_to_hbm [thread:$0]  %s271, 768, %s273, %s257, 384, 384, 24
        $region36: #{tpu_custom_call.1} parent=23 // pred_fallthru
          _
      $region24: #{tpu_custom_call.1} parent=5 // pred_fallthru
        _
      %p279 = scmp.le.s32.totalorder 2, %s11
      // Predicated region
      $region37: #{tpu_custom_call.1} parent=5 // pred_check
        %p280 = pneg %p279
      $region38: #{tpu_custom_call.1} parent=5 // pred_check_branch
        %282 = sbr.rel (%p280) target = $region40
      $region39: #{tpu_custom_call.1} parent=5 // pred_region
        %s283 = ssub.s32 %s11, 2
        // Predicated region
        $region41: #{tpu_custom_call.1} parent=39 // pred_check
          %p284 = pneg %p61
        $region42: #{tpu_custom_call.1} parent=39 // pred_check_branch
          %286 = sbr.rel (%p284) target = $region44
        $region43: #{tpu_custom_call.1} parent=39 // pred_region
          %s287 = sand.u32 %s46, 1
          %s288 = scalar_lea.sflag [#allocation4], %s287
          %s289 = sand.u32 %s46, 1
          %s290 = smul.addr %s289, 48
          %s291 = scalar_lea.vmem [#allocation6], %s290
          %293 = dma.done %s288, 768
        $region44: #{tpu_custom_call.1} parent=39 // pred_fallthru
          _
      $region40: #{tpu_custom_call.1} parent=5 // pred_fallthru
        _
    $region6: #{tpu_custom_call.1} parent=1 // loop_footer
      %s15 = sadd.s32 1, %s11
    $region7: #{tpu_custom_call.1} parent=1 // loop_footer_branch
      %10 = sbr.rel target = $region3
    $region8: #{tpu_custom_call.1} parent=1 // loop_exit
      _
    %294 = vsyncpa [#allocation4], 1
    %s295 = scalar_lea.sflag [#allocation4], 1
    %296 = vsyncpa %s295, 1
    %297 = vsyncpa [#allocation5], 1
    %s298 = scalar_lea.sflag [#allocation5], 1
    %299 = vsyncpa %s298, 1

</llo_original>
